<compile_context>
chip_gen: v7x
topology: tpu7x:2x2x1
jax: 0.10.0
libtpu: 0.0.40
codegen_flags: <defaults>
</compile_context>

<pallas_src>
import functools

import jax
import jax.numpy as jnp
from jax.experimental import pallas as pl
from jax.experimental.pallas import tpu as pltpu


def _img_processor_kernel(patches_ref, w_enc_ref, b_enc_ref, gamma_ref, beta_ref,
                          w_emb_ref, b_emb_ref, enc_out_ref, emb_out_ref):
    # ---- img_encoder: patch embedding (Conv2d k=p, s=p as bf16 matmul, f32 acc) ----
    h = jnp.dot(patches_ref[...], w_enc_ref[...],
                preferred_element_type=jnp.float32)            # [TM, E]  (MXU)
    h = h + b_enc_ref[...]                                     # f32 bias, broadcast (1,E)

    # ---- LayerNorm in f32: one-pass variance (sum + constant scale keeps reduce on XLU) ----
    inv_e = 1.0 / h.shape[-1]
    mu = jnp.sum(h, axis=-1, keepdims=True) * inv_e
    ms = jnp.sum(h * h, axis=-1, keepdims=True) * inv_e
    var = jnp.maximum(ms - mu * mu, 0.0)
    enc = (h - mu) * jax.lax.rsqrt(var + 1e-5)
    enc = enc * gamma_ref[...] + beta_ref[...]                 # [TM, E] f32
    enc_out_ref[...] = enc.astype(enc_out_ref.dtype)

    # ---- embedder: project into word-embedding space (bf16 x bf16 -> f32 acc) ----
    emb = jnp.dot(enc.astype(w_emb_ref.dtype), w_emb_ref[...],
                  preferred_element_type=jnp.float32)          # [TM, D]  (MXU)
    emb_out_ref[...] = (emb + b_emb_ref[...]).astype(emb_out_ref.dtype)


def _round_up(x, m):
    return ((x + m - 1) // m) * m


def _extract_patches_nchw(x, patch):
    """[B, C, H, W] -> [B*N, C*p*p] with per-patch flatten order (C, ph, pw),
    matching a PyTorch Conv2d(C, E, kernel=p, stride=p) weight flatten."""
    B, C, H, W = x.shape
    gh, gw = H // patch, W // patch
    x = x.reshape(B, C, gh, patch, gw, patch)
    x = jnp.transpose(x, (0, 2, 4, 1, 3, 5))            # [B, gh, gw, C, p, p]
    return x.reshape(B * gh * gw, C * patch * patch), (B, gh * gw)


def _vmem_need_bytes(tm, pd, e, d):
    """Approx resident VMEM: double-buffered activation tiles (bf16) + resident weights."""
    bf16, f32 = 2, 4
    weights = (pd * e + e * d) * bf16 + (3 * e + d) * f32
    acts = 2 * tm * pd * bf16 + 2 * tm * e * bf16 + 2 * tm * d * bf16
    return weights + acts


def _pick_tm(t, pd, e, d, tm_max, budget_bytes):
    tm = min(_round_up(max(t, 1), 16), _round_up(tm_max, 16))
    while tm > 16 and _vmem_need_bytes(tm, pd, e, d) > budget_bytes:
        tm = _round_up(tm // 2, 16)
    return tm


@functools.partial(jax.jit, static_argnames=("patch", "tm_max"))
def img_processor_forward(x, params, patch, tm_max=512):
    """Returns (inputs_embeds [B,N,D] bf16, img_encoder_output [B,N,E] bf16)."""
    patches, (B, N) = _extract_patches_nchw(x, patch)
    T, Pd = patches.shape
    E = params["w_enc"].shape[1]
    D = params["w_emb"].shape[1]

    # bf16 MXU operands; biases / LayerNorm affine stay f32.
    patches = patches.astype(jnp.bfloat16)
    w_enc = params["w_enc"].astype(jnp.bfloat16)
    w_emb = params["w_emb"].astype(jnp.bfloat16)
    b_enc = params["b_enc"].astype(jnp.float32).reshape(1, E)
    gamma = params["gamma"].astype(jnp.float32).reshape(1, E)
    beta = params["beta"].astype(jnp.float32).reshape(1, E)
    b_emb = params["b_emb"].astype(jnp.float32).reshape(1, D)

    # ~40 MiB budget keeps headroom on v7x's 64 MiB VMEM; still large tiles on v5e/v6e.
    TM = _pick_tm(T, Pd, E, D, tm_max, budget_bytes=40 << 20)
    T_pad = _round_up(T, TM)
    if T_pad != T:
        patches = jnp.pad(patches, ((0, T_pad - T), (0, 0)))

    vmem_limit = int(min(max(2 * _vmem_need_bytes(TM, Pd, E, D), 32 << 20), 48 << 20))

    # TODO(synk): for production, E and D should be multiples of 128 (pad weights once at
    # init) so output stores are lane-dense; full-dim blocks below still compile otherwise.
    enc_flat, emb_flat = pl.pallas_call(
        _img_processor_kernel,
        out_shape=(
            jax.ShapeDtypeStruct((T_pad, E), jnp.bfloat16),   # img_encoder_output
            jax.ShapeDtypeStruct((T_pad, D), jnp.bfloat16),   # inputs_embeds
        ),
        grid=(T_pad // TM,),
        in_specs=[
            pl.BlockSpec((TM, Pd), lambda i: (i, 0)),   # patches: tiled over T
            pl.BlockSpec((Pd, E), lambda i: (0, 0)),    # patch-embed weight (resident)
            pl.BlockSpec((1, E), lambda i: (0, 0)),     # conv bias
            pl.BlockSpec((1, E), lambda i: (0, 0)),     # LN gamma
            pl.BlockSpec((1, E), lambda i: (0, 0)),     # LN beta
            pl.BlockSpec((E, D), lambda i: (0, 0)),     # embedder weight (resident)
            pl.BlockSpec((1, D), lambda i: (0, 0)),     # embedder bias
        ],
        out_specs=(
            pl.BlockSpec((TM, E), lambda i: (i, 0)),
            pl.BlockSpec((TM, D), lambda i: (i, 0)),
        ),
        compiler_params=pltpu.CompilerParams(
            dimension_semantics=("parallel",),          # rows independent -> megacore on v7x
            vmem_limit_bytes=vmem_limit,
        ),
    )(patches, w_enc, b_enc, gamma, beta, w_emb, b_emb)

    inputs_embeds = emb_flat[:T].reshape(B, N, D)
    img_encoder_output = enc_flat[:T].reshape(B, N, E)
    return inputs_embeds, img_encoder_output


def init_params(key, in_channels, patch, enc_dim, hidden_dim):
    k1, k2, k3, k4 = jax.random.split(key, 4)
    patch_dim = in_channels * patch * patch
    return {
        # Conv2d(C, E, k=p, s=p) weight [E, C, p, p] flattened & transposed -> [C*p*p, E]
        "w_enc": (jax.random.normal(k1, (patch_dim, enc_dim), jnp.float32)
                  * (1.0 / jnp.sqrt(patch_dim))).astype(jnp.bfloat16),
        "b_enc": jax.random.normal(k2, (1, enc_dim), jnp.float32) * 0.02,
        "gamma": jnp.ones((1, enc_dim), jnp.float32),
        "beta": jnp.zeros((1, enc_dim), jnp.float32),
        # Embedder linear: enc_dim -> hidden_dim (word-embedding width)
        "w_emb": (jax.random.normal(k3, (enc_dim, hidden_dim), jnp.float32)
                  * (1.0 / jnp.sqrt(enc_dim))).astype(jnp.bfloat16),
        "b_emb": jax.random.normal(k4, (1, hidden_dim), jnp.float32) * 0.02,
    }


def _reference(x, params, patch):
    """Pure-JAX f32 reference using the same bf16-quantized operands."""
    patches, (B, N) = _extract_patches_nchw(x, patch)
    patches = patches.astype(jnp.bfloat16).astype(jnp.float32)
    w_enc = params["w_enc"].astype(jnp.float32)
    w_emb = params["w_emb"].astype(jnp.float32)
    h = patches @ w_enc + params["b_enc"]
    mu = h.mean(-1, keepdims=True)
    var = ((h - mu) ** 2).mean(-1, keepdims=True)
    enc = (h - mu) / jnp.sqrt(var + 1e-5) * params["gamma"] + params["beta"]
    emb = enc @ w_emb + params["b_emb"]
    E = w_enc.shape[1]
    D = w_emb.shape[1]
    return emb.reshape(B, N, D), enc.reshape(B, N, E)


if __name__ == "__main__":
    # Small shapes consistent with the module's forward: NCHW image input.
    B, C, H, W = 2, 4, 16, 16
    patch = 8
    enc_dim = 128      # img_encoder output width (lane-dense)
    hidden_dim = 128   # word-embedding width (embedder output, lane-dense)

    key = jax.random.PRNGKey(0)
    kx, kp = jax.random.split(key)
    x = jax.random.normal(kx, (B, C, H, W), jnp.float32)
    params = init_params(kp, C, patch, enc_dim, hidden_dim)

    inputs_embeds, img_encoder_output = img_processor_forward(x, params, patch)
    jax.block_until_ready((inputs_embeds, img_encoder_output))

    ref_emb, ref_enc = _reference(x, params, patch)
    N = (H // patch) * (W // patch)
    assert inputs_embeds.shape == (B, N, hidden_dim)
    assert img_encoder_output.shape == (B, N, enc_dim)
    assert jnp.allclose(inputs_embeds.astype(jnp.float32), ref_emb, atol=5e-2, rtol=5e-2)
    assert jnp.allclose(img_encoder_output.astype(jnp.float32), ref_enc, atol=5e-2, rtol=5e-2)

    # TODO(synk): EncoderConfig/EmbedderConfig registries are abstract upstream; this
    # implements the canonical ViT patch-embed encoder + linear embedder pair.
    print("KERNEL_OK")
</pallas_src>

<mosaic_0001>
module attributes {stable_mosaic.version = 11 : i64} {
  func.func @_img_processor_kernel(%arg0: i32, %arg1: memref<16x256xbf16, #tpu.memory_space<vmem>>, %arg2: memref<256x128xbf16, #tpu.memory_space<vmem>>, %arg3: memref<1x128xf32, #tpu.memory_space<vmem>>, %arg4: memref<1x128xf32, #tpu.memory_space<vmem>>, %arg5: memref<1x128xf32, #tpu.memory_space<vmem>>, %arg6: memref<128x128xbf16, #tpu.memory_space<vmem>>, %arg7: memref<1x128xf32, #tpu.memory_space<vmem>>, %arg8: memref<16x128xbf16, #tpu.memory_space<vmem>>, %arg9: memref<16x128xbf16, #tpu.memory_space<vmem>>) attributes {dimension_semantics = [#tpu.dimension_semantics<parallel>], iteration_bounds = array<i64: 1>, scalar_prefetch = 0 : i64, scratch_operands = 0 : i64, tpu.core_type = #tpu.core_type<tc>, window_params = [{transform_indices = @transform_0, window_bounds = array<i64: 16, 256>}, {pipeline_mode = #tpu.pipeline_mode<synchronous>, transform_indices = @transform_1, window_bounds = array<i64: 256, 128>}, {pipeline_mode = #tpu.pipeline_mode<synchronous>, transform_indices = @transform_2, window_bounds = array<i64: 1, 128>}, {pipeline_mode = #tpu.pipeline_mode<synchronous>, transform_indices = @transform_3, window_bounds = array<i64: 1, 128>}, {pipeline_mode = #tpu.pipeline_mode<synchronous>, transform_indices = @transform_4, window_bounds = array<i64: 1, 128>}, {pipeline_mode = #tpu.pipeline_mode<synchronous>, transform_indices = @transform_5, window_bounds = array<i64: 128, 128>}, {pipeline_mode = #tpu.pipeline_mode<synchronous>, transform_indices = @transform_6, window_bounds = array<i64: 1, 128>}, {transform_indices = @transform_7, window_bounds = array<i64: 16, 128>}, {transform_indices = @transform_8, window_bounds = array<i64: 16, 128>}]} {
    %c0 = arith.constant 0 : index
    %c0_0 = arith.constant 0 : index
    %0 = vector.load %arg1[%c0, %c0_0] : memref<16x256xbf16, #tpu.memory_space<vmem>>, vector<16x256xbf16>
    %c0_1 = arith.constant 0 : index
    %c0_2 = arith.constant 0 : index
    %1 = vector.load %arg2[%c0_1, %c0_2] : memref<256x128xbf16, #tpu.memory_space<vmem>>, vector<256x128xbf16>
    %cst = arith.constant dense<0.000000e+00> : vector<16x128xf32>
    %2 = tpu.matmul %0, %1, %cst {dimension_numbers = #tpu.dot_dimension_numbers<[1], [0], [0], [1], [0, 0, 1, 1], [], []>} : vector<16x256xbf16>, vector<256x128xbf16>, vector<16x128xf32> -> vector<16x128xf32>
    %c0_3 = arith.constant 0 : index
    %c0_4 = arith.constant 0 : index
    %3 = vector.load %arg3[%c0_3, %c0_4] : memref<1x128xf32, #tpu.memory_space<vmem>>, vector<1x128xf32>
    %4 = vector.broadcast %3 : vector<1x128xf32> to vector<16x128xf32>
    %5 = arith.addf %2, %4 : vector<16x128xf32>
    %cst_5 = arith.constant dense<0.000000e+00> : vector<16xf32>
    %6 = vector.multi_reduction <add>, %5, %cst_5 [1] : vector<16x128xf32> to vector<16xf32>
    %7 = vector.shape_cast %6 : vector<16xf32> to vector<16x1xf32>
    %cst_6 = arith.constant 7.812500e-03 : f32
    %8 = vector.broadcast %cst_6 : f32 to vector<16x1xf32>
    %9 = arith.mulf %7, %8 : vector<16x1xf32>
    %10 = arith.mulf %5, %5 : vector<16x128xf32>
    %cst_7 = arith.constant dense<0.000000e+00> : vector<16xf32>
    %11 = vector.multi_reduction <add>, %10, %cst_7 [1] : vector<16x128xf32> to vector<16xf32>
    %12 = vector.shape_cast %11 : vector<16xf32> to vector<16x1xf32>
    %cst_8 = arith.constant 7.812500e-03 : f32
    %13 = vector.broadcast %cst_8 : f32 to vector<16x1xf32>
    %14 = arith.mulf %12, %13 : vector<16x1xf32>
    %15 = arith.mulf %9, %9 : vector<16x1xf32>
    %16 = arith.subf %14, %15 : vector<16x1xf32>
    %cst_9 = arith.constant 0.000000e+00 : f32
    %17 = vector.broadcast %cst_9 : f32 to vector<16x1xf32>
    %18 = arith.maximumf %16, %17 : vector<16x1xf32>
    %19 = vector.broadcast %9 : vector<16x1xf32> to vector<16x128xf32>
    %20 = arith.subf %5, %19 : vector<16x128xf32>
    %cst_10 = arith.constant 9.99999974E-6 : f32
    %21 = vector.broadcast %cst_10 : f32 to vector<16x1xf32>
    %22 = arith.addf %18, %21 : vector<16x1xf32>
    %23 = math.rsqrt %22 : vector<16x1xf32>
    %24 = vector.broadcast %23 : vector<16x1xf32> to vector<16x128xf32>
    %25 = arith.mulf %20, %24 : vector<16x128xf32>
    %c0_11 = arith.constant 0 : index
    %c0_12 = arith.constant 0 : index
    %26 = vector.load %arg4[%c0_11, %c0_12] : memref<1x128xf32, #tpu.memory_space<vmem>>, vector<1x128xf32>
    %27 = vector.broadcast %26 : vector<1x128xf32> to vector<16x128xf32>
    %28 = arith.mulf %25, %27 : vector<16x128xf32>
    %c0_13 = arith.constant 0 : index
    %c0_14 = arith.constant 0 : index
    %29 = vector.load %arg5[%c0_13, %c0_14] : memref<1x128xf32, #tpu.memory_space<vmem>>, vector<1x128xf32>
    %30 = vector.broadcast %29 : vector<1x128xf32> to vector<16x128xf32>
    %31 = arith.addf %28, %30 : vector<16x128xf32>
    %32 = arith.truncf %31 : vector<16x128xf32> to vector<16x128xbf16>
    %c0_15 = arith.constant 0 : index
    %c0_16 = arith.constant 0 : index
    %33 = vector.load %arg8[%c0_15, %c0_16] : memref<16x128xbf16, #tpu.memory_space<vmem>>, vector<16x128xbf16>
    tpu.vector_store %arg8[%c0_15, %c0_16], %32 {strides = array<i32>} : memref<16x128xbf16, #tpu.memory_space<vmem>>, vector<16x128xbf16>,
    %34 = arith.truncf %31 : vector<16x128xf32> to vector<16x128xbf16>
    %c0_17 = arith.constant 0 : index
    %c0_18 = arith.constant 0 : index
    %35 = vector.load %arg6[%c0_17, %c0_18] : memref<128x128xbf16, #tpu.memory_space<vmem>>, vector<128x128xbf16>
    %cst_19 = arith.constant dense<0.000000e+00> : vector<16x128xf32>
    %36 = tpu.matmul %34, %35, %cst_19 {dimension_numbers = #tpu.dot_dimension_numbers<[1], [0], [0], [1], [0, 0, 1, 1], [], []>} : vector<16x128xbf16>, vector<128x128xbf16>, vector<16x128xf32> -> vector<16x128xf32>
    %c0_20 = arith.constant 0 : index
    %c0_21 = arith.constant 0 : index
    %37 = vector.load %arg7[%c0_20, %c0_21] : memref<1x128xf32, #tpu.memory_space<vmem>>, vector<1x128xf32>
    %38 = vector.broadcast %37 : vector<1x128xf32> to vector<16x128xf32>
    %39 = arith.addf %36, %38 : vector<16x128xf32>
    %40 = arith.truncf %39 : vector<16x128xf32> to vector<16x128xbf16>
    %c0_22 = arith.constant 0 : index
    %c0_23 = arith.constant 0 : index
    %41 = vector.load %arg9[%c0_22, %c0_23] : memref<16x128xbf16, #tpu.memory_space<vmem>>, vector<16x128xbf16>
    tpu.vector_store %arg9[%c0_22, %c0_23], %40 {strides = array<i32>} : memref<16x128xbf16, #tpu.memory_space<vmem>>, vector<16x128xbf16>,
    return
  }
  func.func @transform_0(%arg0: i32) -> (i32, i32) {
    %c0_i32 = arith.constant 0 : i32
    %c0_i32_0 = arith.constant 0 : i32
    return %arg0, %c0_i32 : i32, i32
  }
  func.func @transform_1(%arg0: i32) -> (i32, i32) {
    %c0_i32 = arith.constant 0 : i32
    %c0_i32_0 = arith.constant 0 : i32
    %c0_i32_1 = arith.constant 0 : i32
    return %c0_i32, %c0_i32_0 : i32, i32
  }
  func.func @transform_2(%arg0: i32) -> (i32, i32) {
    %c0_i32 = arith.constant 0 : i32
    %c0_i32_0 = arith.constant 0 : i32
    %c0_i32_1 = arith.constant 0 : i32
    return %c0_i32, %c0_i32_0 : i32, i32
  }
  func.func @transform_3(%arg0: i32) -> (i32, i32) {
    %c0_i32 = arith.constant 0 : i32
    %c0_i32_0 = arith.constant 0 : i32
    %c0_i32_1 = arith.constant 0 : i32
    return %c0_i32, %c0_i32_0 : i32, i32
  }
  func.func @transform_4(%arg0: i32) -> (i32, i32) {
    %c0_i32 = arith.constant 0 : i32
    %c0_i32_0 = arith.constant 0 : i32
    %c0_i32_1 = arith.constant 0 : i32
    return %c0_i32, %c0_i32_0 : i32, i32
  }
  func.func @transform_5(%arg0: i32) -> (i32, i32) {
    %c0_i32 = arith.constant 0 : i32
    %c0_i32_0 = arith.constant 0 : i32
    %c0_i32_1 = arith.constant 0 : i32
    return %c0_i32, %c0_i32_0 : i32, i32
  }
  func.func @transform_6(%arg0: i32) -> (i32, i32) {
    %c0_i32 = arith.constant 0 : i32
    %c0_i32_0 = arith.constant 0 : i32
    %c0_i32_1 = arith.constant 0 : i32
    return %c0_i32, %c0_i32_0 : i32, i32
  }
  func.func @transform_7(%arg0: i32) -> (i32, i32) {
    %c0_i32 = arith.constant 0 : i32
    %c0_i32_0 = arith.constant 0 : i32
    return %arg0, %c0_i32 : i32, i32
  }
  func.func @transform_8(%arg0: i32) -> (i32, i32) {
    %c0_i32 = arith.constant 0 : i32
    %c0_i32_0 = arith.constant 0 : i32
    return %arg0, %c0_i32 : i32, i32
  }
}

</mosaic_0001>

<llo_original>
// kernel: img_processor_forward.1
$region0: #{img_processor_forward.1}
  #allocation0 [shape = 'u32[]', space=smem, size = 0x4, offset = 0x4, fixed_abs, tag = 'smem constant byte address 0x4 - core index']
  #allocation1 [shape = 'u32[144,128]{1,0:T(1,128)}', space=vmem, size = 0x12000, scoped, tag = 'internal scratch']
  %s0 = inlined_call_operand.vmem [shape: bf16[16,256], index: 0, kind: input, shape index: {}]
  %s1 = inlined_call_operand.vmem [shape: bf16[256,128], index: 1, kind: input, shape index: {}]
  %s2 = inlined_call_operand.vmem [shape: f32[1,128], index: 2, kind: input, shape index: {}]
  %s3 = inlined_call_operand.vmem [shape: f32[1,128], index: 3, kind: input, shape index: {}]
  %s4 = inlined_call_operand.vmem [shape: f32[1,128], index: 4, kind: input, shape index: {}]
  %s5 = inlined_call_operand.vmem [shape: bf16[128,128], index: 5, kind: input, shape index: {}]
  %s6 = inlined_call_operand.vmem [shape: f32[1,128], index: 6, kind: input, shape index: {}]
  %s7 = inlined_call_operand.vmem [shape: bf16[16,128], index: 7, kind: output, shape index: {0}]
  %s8 = inlined_call_operand.vmem [shape: bf16[16,128], index: 8, kind: output, shape index: {1}]
  %9 = xla_tuple %s7, %s8
  %s10 = sld [smem:[#allocation0]]
  $region46: #{img_processor_forward.1} parent=0
    _
  %s12 = ssub.s32 1, %s10
  %s13 = scalar_select 0, %s12, %s10
  // Predicated region
  $region2: #{img_processor_forward.1} parent=0 // pred_check
    _
  $region3: #{img_processor_forward.1} parent=0 // pred_check_branch
    %15 = sbr.rel (0) target = $region5
  $region4: #{img_processor_forward.1} parent=0 // pred_region
    _
  $region5: #{img_processor_forward.1} parent=0 // pred_fallthru
    _
  // Predicated region
  $region6: #{img_processor_forward.1} parent=0 // pred_check
    _
  $region7: #{img_processor_forward.1} parent=0 // pred_check_branch
    %17 = sbr.rel (0) target = $region9
  $region8: #{img_processor_forward.1} parent=0 // pred_region
    _
  $region9: #{img_processor_forward.1} parent=0 // pred_fallthru
    _
  // Predicated region
  $region10: #{img_processor_forward.1} parent=0 // pred_check
    _
  $region11: #{img_processor_forward.1} parent=0 // pred_check_branch
    %19 = sbr.rel (0) target = $region13
  $region12: #{img_processor_forward.1} parent=0 // pred_region
    _
  $region13: #{img_processor_forward.1} parent=0 // pred_fallthru
    _
  // Predicated region
  $region14: #{img_processor_forward.1} parent=0 // pred_check
    _
  $region15: #{img_processor_forward.1} parent=0 // pred_check_branch
    %21 = sbr.rel (0) target = $region17
  $region16: #{img_processor_forward.1} parent=0 // pred_region
    _
  $region17: #{img_processor_forward.1} parent=0 // pred_fallthru
    _
  // Predicated region
  $region18: #{img_processor_forward.1} parent=0 // pred_check
    _
  $region19: #{img_processor_forward.1} parent=0 // pred_check_branch
    %23 = sbr.rel (0) target = $region21
  $region20: #{img_processor_forward.1} parent=0 // pred_region
    _
  $region21: #{img_processor_forward.1} parent=0 // pred_fallthru
    _
  // Predicated region
  $region22: #{img_processor_forward.1} parent=0 // pred_check
    _
  $region23: #{img_processor_forward.1} parent=0 // pred_check_branch
    %25 = sbr.rel (0) target = $region25
  $region24: #{img_processor_forward.1} parent=0 // pred_region
    _
  $region25: #{img_processor_forward.1} parent=0 // pred_fallthru
    _
  // Predicated region
  $region26: #{img_processor_forward.1} parent=0 // pred_check
    _
  $region27: #{img_processor_forward.1} parent=0 // pred_check_branch
    %27 = sbr.rel (0) target = $region29
  $region28: #{img_processor_forward.1} parent=0 // pred_region
    _
  $region29: #{img_processor_forward.1} parent=0 // pred_fallthru
    _
  %v29 = vld [vmem:[%s0] sm:$0xff]
  %v30 = vld [vmem:[%s0 + $0x8] sm:$0xff]
  %v31 = vld [vmem:[%s1] sm:$0xf]
  %v32 = vld [vmem:[%s1 + $0x4] sm:$0xf]
  %v33 = vld [vmem:[%s1 + $0x8] sm:$0xf]
  %v34 = vld [vmem:[%s1 + $0xc] sm:$0xf]
  %v35 = vld [vmem:[%s1 + $0x10] sm:$0xf]
  %v36 = vld [vmem:[%s1 + $0x14] sm:$0xf]
  %v37 = vld [vmem:[%s1 + $0x18] sm:$0xf]
  %v38 = vld [vmem:[%s1 + $0x1c] sm:$0xf]
  %v39 = vld [vmem:[%s1 + $0x20] sm:$0xf]
  %v40 = vld [vmem:[%s1 + $0x24] sm:$0xf]
  %v41 = vld [vmem:[%s1 + $0x28] sm:$0xf]
  %v42 = vld [vmem:[%s1 + $0x2c] sm:$0xf]
  %v43 = vld [vmem:[%s1 + $0x30] sm:$0xf]
  %v44 = vld [vmem:[%s1 + $0x34] sm:$0xf]
  %v45 = vld [vmem:[%s1 + $0x38] sm:$0xf]
  %v46 = vld [vmem:[%s1 + $0x3c] sm:$0xf]
  %v47 = vld [vmem:[%s1 + $0x40] sm:$0xf]
  %v48 = vld [vmem:[%s1 + $0x44] sm:$0xf]
  %v49 = vld [vmem:[%s1 + $0x48] sm:$0xf]
  %v50 = vld [vmem:[%s1 + $0x4c] sm:$0xf]
  %v51 = vld [vmem:[%s1 + $0x50] sm:$0xf]
  %v52 = vld [vmem:[%s1 + $0x54] sm:$0xf]
  %v53 = vld [vmem:[%s1 + $0x58] sm:$0xf]
  %v54 = vld [vmem:[%s1 + $0x5c] sm:$0xf]
  %v55 = vld [vmem:[%s1 + $0x60] sm:$0xf]
  %v56 = vld [vmem:[%s1 + $0x64] sm:$0xf]
  %v57 = vld [vmem:[%s1 + $0x68] sm:$0xf]
  %v58 = vld [vmem:[%s1 + $0x6c] sm:$0xf]
  %v59 = vld [vmem:[%s1 + $0x70] sm:$0xf]
  %v60 = vld [vmem:[%s1 + $0x74] sm:$0xf]
  %v61 = vld [vmem:[%s1 + $0x78] sm:$0xf]
  %v62 = vld [vmem:[%s1 + $0x7c] sm:$0xf]
  %v63 = vld [vmem:[%s2] sm:$0x1]
  %v65 = vlaneseq
  %v66 = vshrl.u32 %v65, 7
  %v67 = vsub.s32 0, %v66
  %v68 = vrot.slane %v63, %v67
  %v72 = vunpack.c.l.b16 %v29
  %v73 = vunpack.c.h.b16 %v29
  %v74 = vunpack.c.l.b16 %v30
  %v75 = vunpack.c.h.b16 %v30
  %v76 = vpack.c.b16 %v74, %v72
  %v77 = vpack.c.b16 %v75, %v73
  %v112 = vunpack.c.l.b16 %v31
  %v113 = vunpack.c.l.b16 %v32
  %v114 = vunpack.c.l.b16 %v33
  %v115 = vunpack.c.l.b16 %v34
  %v116 = vunpack.c.l.b16 %v35
  %v117 = vunpack.c.l.b16 %v36
  %v118 = vunpack.c.l.b16 %v37
  %v119 = vunpack.c.l.b16 %v38
  %v120 = vunpack.c.l.b16 %v39
  %v121 = vunpack.c.l.b16 %v40
  %v122 = vunpack.c.l.b16 %v41
  %v123 = vunpack.c.l.b16 %v42
  %v124 = vunpack.c.l.b16 %v43
  %v125 = vunpack.c.l.b16 %v44
  %v126 = vunpack.c.l.b16 %v45
  %v127 = vunpack.c.l.b16 %v46
  %v128 = vunpack.c.l.b16 %v47
  %v129 = vunpack.c.l.b16 %v48
  %v130 = vunpack.c.l.b16 %v49
  %v131 = vunpack.c.l.b16 %v50
  %v132 = vunpack.c.l.b16 %v51
  %v133 = vunpack.c.l.b16 %v52
  %v134 = vunpack.c.l.b16 %v53
  %v135 = vunpack.c.l.b16 %v54
  %v136 = vunpack.c.l.b16 %v55
  %v137 = vunpack.c.l.b16 %v56
  %v138 = vunpack.c.l.b16 %v57
  %v139 = vunpack.c.l.b16 %v58
  %v140 = vunpack.c.l.b16 %v59
  %v141 = vunpack.c.l.b16 %v60
  %v142 = vunpack.c.l.b16 %v61
  %v143 = vunpack.c.l.b16 %v62
  %v144 = vpack.c.b16 %v113, %v112
  %v145 = vpack.c.b16 %v115, %v114
  %v146 = vpack.c.b16 %v117, %v116
  %v147 = vpack.c.b16 %v119, %v118
  %v148 = vpack.c.b16 %v121, %v120
  %v149 = vpack.c.b16 %v123, %v122
  %v150 = vpack.c.b16 %v125, %v124
  %v151 = vpack.c.b16 %v127, %v126
  %v152 = vpack.c.b16 %v129, %v128
  %v153 = vpack.c.b16 %v131, %v130
  %v154 = vpack.c.b16 %v133, %v132
  %v155 = vpack.c.b16 %v135, %v134
  %v156 = vpack.c.b16 %v137, %v136
  %v157 = vpack.c.b16 %v139, %v138
  %v158 = vpack.c.b16 %v141, %v140
  %v159 = vpack.c.b16 %v143, %v142
  %176 = vmatprep.subr.bf16.mxu0 0
  %177 = vmatpush1.bf16.msra.mxu0 %v144
  %178 = vmatprep.subr.bf16.mxu0 0
  %179 = vmatpush1.bf16.msra.mxu0 %v145
  %180 = vmatprep.subr.bf16.mxu0 0
  %181 = vmatpush1.bf16.msra.mxu0 %v146
  %182 = vmatprep.subr.bf16.mxu0 0
  %183 = vmatpush1.bf16.msra.mxu0 %v147
  %184 = vmatprep.subr.bf16.mxu0 0
  %185 = vmatpush1.bf16.msra.mxu0 %v148
  %186 = vmatprep.subr.bf16.mxu0 0
  %187 = vmatpush1.bf16.msra.mxu0 %v149
  %188 = vmatprep.subr.bf16.mxu0 0
  %189 = vmatpush1.bf16.msra.mxu0 %v150
  %190 = vmatprep.subr.bf16.mxu0 0
  %191 = vmatpush1.bf16.msra.mxu0 %v151
  %192 = vmatprep.subr.bf16.mxu0 0
  %193 = vmatpush1.bf16.msra.mxu0 %v152
  %194 = vmatprep.subr.bf16.mxu0 0
  %195 = vmatpush1.bf16.msra.mxu0 %v153
  %196 = vmatprep.subr.bf16.mxu0 0
  %197 = vmatpush1.bf16.msra.mxu0 %v154
  %198 = vmatprep.subr.bf16.mxu0 0
  %199 = vmatpush1.bf16.msra.mxu0 %v155
  %200 = vmatprep.subr.bf16.mxu0 0
  %201 = vmatpush1.bf16.msra.mxu0 %v156
  %202 = vmatprep.subr.bf16.mxu0 0
  %203 = vmatpush1.bf16.msra.mxu0 %v157
  %204 = vmatprep.subr.bf16.mxu0 0
  %205 = vmatpush1.bf16.msra.mxu0 %v158
  %206 = vmatprep.subr.bf16.mxu0 0
  %207 = vmatpush1.bf16.msra.mxu0 %v159
  %208 = vmatprep.mubr.bf16.mxu0 %v77
  %209 = vmatmul.mubr.bf16.gmra.mrb[0].mxu0 %v76
  %v210 = vpop.f32.mrb[0].mxu0
  %v211 = vadd.f32 %v68, %v210
  %v212 = vpop.f32.mrb[0].mxu0
  %v213 = vpop.f32.mrb[0].mxu0
  %v214 = vadd.f32 %v68, %v213
  %v215 = vpop.f32.mrb[0].mxu0
  %216 = vdwg.mxu0
  %217 = vadd.xlane.f32.xlu0 %v211
  %v218 = vpop.xlane.xlu0 %217
  %219 = vadd.xlane.f32.xlu0 %v214
  %v220 = vpop.xlane.xlu0 %219
  %v221 = vmul.f32 %v218, 0.0078125
  %v222 = vmul.f32 %v220, 0.0078125
  %v223 = vmul.f32 %v211, %v211
  %v224 = vmul.f32 %v214, %v214
  %225 = vadd.xlane.f32.xlu0 %v223
  %v226 = vpop.xlane.xlu0 %225
  %227 = vadd.xlane.f32.xlu0 %v224
  %v228 = vpop.xlane.xlu0 %227
  %v229 = vmul.f32 %v226, 0.0078125
  %v230 = vmul.f32 %v228, 0.0078125
  %v231 = vmul.f32 %v221, %v221
  %v232 = vmul.f32 %v222, %v222
  %v233 = vsub.f32 %v229, %v231
  %v234 = vsub.f32 %v230, %v232
  %v235 = vmax.f32 %v233, 0.0
  %v236 = vmax.f32 %v234, 0.0
  %v237 = vsub.f32 %v211, %v221
  %v238 = vsub.f32 %v214, %v222
  %v239 = vadd.f32 %v235, 1e-05
  %v240 = vadd.f32 %v236, 1e-05
  %v241 = vrsqrt.pop %v239
  %v242 = vrsqrt.pop %v240
  %v243 = vmul.f32 %v237, %v241
  %v244 = vmul.f32 %v238, %v242
  %v245 = vld [vmem:[%s3] sm:$0x1]
  %v247 = vlaneseq
  %v248 = vshrl.u32 %v247, 7
  %v249 = vsub.s32 0, %v248
  %v250 = vrot.slane %v245, %v249
  %v252 = vmul.f32 %v243, %v250
  %v253 = vmul.f32 %v244, %v250
  %v254 = vld [vmem:[%s4] sm:$0x1]
  %v256 = vlaneseq
  %v257 = vshrl.u32 %v256, 7
  %v258 = vsub.s32 0, %v257
  %v259 = vrot.slane %v254, %v258
  %v261 = vadd.f32 %v252, %v259
  %v262 = vadd.f32 %v253, %v259
  %v263 = vpack.c.bf16 %v262, %v261
  %v265 = vunpack.c.l.b16 %v263
  %v266 = vunpack.c.h.b16 %v263
  %v267 = vpack.c.b16 %v265, %v265
  %v268 = vpack.c.b16 %v266, %v266
  %271 = vst [vmem:[%s7] sm:$0xf] %v267
  %272 = vst [vmem:[%s7 + $0x4] sm:$0xf] %v268
  %v273 = vld [vmem:[%s5] sm:$0xf]
  %v274 = vld [vmem:[%s5 + $0x4] sm:$0xf]
  %v275 = vld [vmem:[%s5 + $0x8] sm:$0xf]
  %v276 = vld [vmem:[%s5 + $0xc] sm:$0xf]
  %v277 = vld [vmem:[%s5 + $0x10] sm:$0xf]
  %v278 = vld [vmem:[%s5 + $0x14] sm:$0xf]
  %v279 = vld [vmem:[%s5 + $0x18] sm:$0xf]
  %v280 = vld [vmem:[%s5 + $0x1c] sm:$0xf]
  %v281 = vld [vmem:[%s5 + $0x20] sm:$0xf]
  %v282 = vld [vmem:[%s5 + $0x24] sm:$0xf]
  %v283 = vld [vmem:[%s5 + $0x28] sm:$0xf]
  %v284 = vld [vmem:[%s5 + $0x2c] sm:$0xf]
  %v285 = vld [vmem:[%s5 + $0x30] sm:$0xf]
  %v286 = vld [vmem:[%s5 + $0x34] sm:$0xf]
  %v287 = vld [vmem:[%s5 + $0x38] sm:$0xf]
  %v288 = vld [vmem:[%s5 + $0x3c] sm:$0xf]
  %v289 = vld [vmem:[%s6] sm:$0x1]
  %v291 = vlaneseq
  %v292 = vshrl.u32 %v291, 7
  %v293 = vsub.s32 0, %v292
  %v294 = vrot.slane %v289, %v293
  %v312 = vunpack.c.l.b16 %v273
  %v313 = vunpack.c.l.b16 %v274
  %v314 = vunpack.c.l.b16 %v275
  %v315 = vunpack.c.l.b16 %v276
  %v316 = vunpack.c.l.b16 %v277
  %v317 = vunpack.c.l.b16 %v278
  %v318 = vunpack.c.l.b16 %v279
  %v319 = vunpack.c.l.b16 %v280
  %v320 = vunpack.c.l.b16 %v281
  %v321 = vunpack.c.l.b16 %v282
  %v322 = vunpack.c.l.b16 %v283
  %v323 = vunpack.c.l.b16 %v284
  %v324 = vunpack.c.l.b16 %v285
  %v325 = vunpack.c.l.b16 %v286
  %v326 = vunpack.c.l.b16 %v287
  %v327 = vunpack.c.l.b16 %v288
  %v328 = vpack.c.b16 %v313, %v312
  %v329 = vpack.c.b16 %v315, %v314
  %v330 = vpack.c.b16 %v317, %v316
  %v331 = vpack.c.b16 %v319, %v318
  %v332 = vpack.c.b16 %v321, %v320
  %v333 = vpack.c.b16 %v323, %v322
  %v334 = vpack.c.b16 %v325, %v324
  %v335 = vpack.c.b16 %v327, %v326
  %344 = vmatprep.subr.bf16.mxu0 0
  %345 = vmatpush1.bf16.msra.mxu0 %v328
  %346 = vmatprep.subr.bf16.mxu0 0
  %347 = vmatpush1.bf16.msra.mxu0 %v329
  %348 = vmatprep.subr.bf16.mxu0 0
  %349 = vmatpush1.bf16.msra.mxu0 %v330
  %350 = vmatprep.subr.bf16.mxu0 0
  %351 = vmatpush1.bf16.msra.mxu0 %v331
  %352 = vmatprep.subr.bf16.mxu0 0
  %353 = vmatpush1.bf16.msra.mxu0 %v332
  %354 = vmatprep.subr.bf16.mxu0 0
  %355 = vmatpush1.bf16.msra.mxu0 %v333
  %356 = vmatprep.subr.bf16.mxu0 0
  %357 = vmatpush1.bf16.msra.mxu0 %v334
  %358 = vmatprep.subr.bf16.mxu0 0
  %359 = vmatpush1.bf16.msra.mxu0 %v335
  %360 = vmatprep.subr.bf16.mxu0 0
  %361 = vmatpush1.bf16.msra.mxu0 0
  %362 = vmatprep.subr.bf16.mxu0 0
  %363 = vmatpush1.bf16.msra.mxu0 0
  %364 = vmatprep.subr.bf16.mxu0 0
  %365 = vmatpush1.bf16.msra.mxu0 0
  %366 = vmatprep.subr.bf16.mxu0 0
  %367 = vmatpush1.bf16.msra.mxu0 0
  %368 = vmatprep.subr.bf16.mxu0 0
  %369 = vmatpush1.bf16.msra.mxu0 0
  %370 = vmatprep.subr.bf16.mxu0 0
  %371 = vmatpush1.bf16.msra.mxu0 0
  %372 = vmatprep.subr.bf16.mxu0 0
  %373 = vmatpush1.bf16.msra.mxu0 0
  %374 = vmatprep.subr.bf16.mxu0 0
  %375 = vmatpush1.bf16.msra.mxu0 0
  %376 = vmatprep.mubr.bf16.mxu0 0
  %377 = vmatmul.mubr.bf16.gmra.mrb[0].mxu0 %v263
  %v378 = vpop.f32.mrb[0].mxu0
  %v379 = vadd.f32 %v294, %v378
  %v380 = vpop.f32.mrb[0].mxu0
  %v381 = vpop.f32.mrb[0].mxu0
  %v382 = vadd.f32 %v294, %v381
  %v383 = vpop.f32.mrb[0].mxu0
  %384 = vdwg.mxu0
  %v385 = vpack.c.bf16 %v382, %v379
  %v387 = vunpack.c.l.b16 %v385
  %v388 = vunpack.c.h.b16 %v385
  %v389 = vpack.c.b16 %v387, %v387
  %v390 = vpack.c.b16 %v388, %v388
  %393 = vst [vmem:[%s8] sm:$0xf] %v389
  %394 = vst [vmem:[%s8 + $0x4] sm:$0xf] %v390
  // Predicated region
  $region30: #{img_processor_forward.1} parent=0 // pred_check
    _
  $region31: #{img_processor_forward.1} parent=0 // pred_check_branch
    %396 = sbr.rel (0) target = $region33
  $region32: #{img_processor_forward.1} parent=0 // pred_region
    _
  $region33: #{img_processor_forward.1} parent=0 // pred_fallthru
    _
  // Predicated region
  $region34: #{img_processor_forward.1} parent=0 // pred_check
    _
  $region35: #{img_processor_forward.1} parent=0 // pred_check_branch
    %398 = sbr.rel (0) target = $region37
  $region36: #{img_processor_forward.1} parent=0 // pred_region
    _
  $region37: #{img_processor_forward.1} parent=0 // pred_fallthru
    _
  // Predicated region
  $region38: #{img_processor_forward.1} parent=0 // pred_check
    _
  $region39: #{img_processor_forward.1} parent=0 // pred_check_branch
    %400 = sbr.rel (0) target = $region41
  $region40: #{img_processor_forward.1} parent=0 // pred_region
    _
  $region41: #{img_processor_forward.1} parent=0 // pred_fallthru
    _
  // Predicated region
  $region42: #{img_processor_forward.1} parent=0 // pred_check
    _
  $region43: #{img_processor_forward.1} parent=0 // pred_check_branch
    %402 = sbr.rel (0) target = $region45
  $region44: #{img_processor_forward.1} parent=0 // pred_region
    _
  $region45: #{img_processor_forward.1} parent=0 // pred_fallthru
    _

</llo_original>
